<compile_context>
chip_gen: v5e
topology: v5e:2x2
jax: 0.10.0
libtpu: 0.0.40
codegen_flags: <defaults>
</compile_context>

<pallas_src>
import functools
import math

import jax
import jax.numpy as jnp
from jax import lax
from jax.experimental import pallas as pl
from jax.experimental.pallas import tpu as pltpu


# ---------------------------------------------------------------------------
# Small helpers
# ---------------------------------------------------------------------------
def _round_up(x, m):
    return ((x + m - 1) // m) * m


def _cdiv(a, b):
    return -(-a // b)


def _as(v, dtype):
    return v if v.dtype == dtype else v.astype(dtype)


@functools.lru_cache(maxsize=None)
def _vmem_budget_bytes():
    """Per-TensorCore VMEM budget with headroom for compiler scratch / semaphores."""
    cap = 64 << 20  # conservative fallback (v7x-sized)
    try:
        info = pltpu.get_tpu_info()
        cap = int(getattr(info, "vmem_capacity_bytes", cap))
    except Exception:
        pass
    # ~20% headroom: critical on v7x (64 MiB/TC); on v5e/v6e (128 MiB) this still
    # leaves ~100 MiB usable so large resident weights / big tiles are allowed.
    return max(32 << 20, int(cap * 4 // 5))


def _sublane_rows(itemsize):
    # f32 -> 8, bf16 -> 16, int8/fp8 -> 32 (sub-32-bit dtypes pack along sublanes).
    return 8 * max(1, 4 // max(1, itemsize))


def _pick_tm(M, itemsize, max_tm=512):
    """Sublane-aligned row tile that keeps padding below one sublane group."""
    sub = _sublane_rows(itemsize)
    if M <= max_tm:
        return max(sub, _round_up(M, sub))
    n_tiles = _cdiv(M, max_tm)
    return _round_up(_cdiv(M, n_tiles), sub)


def _pick_divisor_tile(dim, target, aligns):
    """Largest multiple-of-align divisor of `dim` that is <= target (else `dim`)."""
    for a in aligns:
        if dim % a:
            continue
        t = min((max(target, a) // a) * a, dim)
        while t >= a:
            if dim % t == 0:
                return t
            t -= a
    return dim


def _spec(shape, index_map, buffers=None, enable=True):
    """BlockSpec with optional pipeline_mode (Buffered(1) => resident, single copy)."""
    if buffers is not None and enable:
        return pl.BlockSpec(shape, index_map, pipeline_mode=pl.Buffered(buffers))
    return pl.BlockSpec(shape, index_map)


# ---------------------------------------------------------------------------
# Stage 1 (materialized path): build adapted_W with a tiled 1-D grid.
# ---------------------------------------------------------------------------
def _adapt_pre_kernel(w_ref, a_ref, b_ref, adapted_ref, *, scaling, do_rri):
    # W tile: (out, tc), A: (r, out), B: (out, r)
    w = w_ref[...]
    a = _as(a_ref[...], w.dtype)
    b = _as(b_ref[...], w.dtype)
    aw = jnp.dot(a, w, preferred_element_type=jnp.float32)              # (r, tc)
    aw = _as(aw * scaling, w.dtype)          # scale tiny (r, tc); keep 2nd dot on native MXU path
    adapted = jnp.dot(b, aw, preferred_element_type=jnp.float32)        # (out, tc)
    if do_rri:
        adapted = adapted + _as(w, jnp.float32)
    adapted_ref[...] = adapted.astype(adapted_ref.dtype)


def _adapt_post_kernel(w_ref, a_ref, b_ref, adapted_ref, *, scaling, do_rri):
    # W tile: (tr, in), B: (in, r), A: (r, in)
    w = w_ref[...]
    a = _as(a_ref[...], w.dtype)
    b = _as(b_ref[...], w.dtype)
    wb = jnp.dot(w, b, preferred_element_type=jnp.float32)              # (tr, r)
    if do_rri:
        wb = wb * scaling                    # torch scales only on the do_rri path in "post"
    wb = _as(wb, w.dtype)
    adapted = jnp.dot(wb, a, preferred_element_type=jnp.float32)        # (tr, in)
    if do_rri:
        adapted = adapted + _as(w, jnp.float32)
    adapted_ref[...] = adapted.astype(adapted_ref.dtype)


def _adapt_weight(weight, lora_A, lora_B, *, mode, scaling, do_rri, adapted_dtype):
    out_f, in_f = weight.shape
    r = lora_A.shape[0]
    item = jnp.dtype(weight.dtype).itemsize
    a_item = jnp.dtype(adapted_dtype).itemsize
    budget = _vmem_budget_bytes()

    if mode == "pre":
        # Tile W / adapted over in_features columns; A, B (tiny) stay resident.
        per_col = 2 * out_f * item + 2 * out_f * a_item + 4 * out_f + 4 * r
        target = max(128, (budget // 2) // max(per_col, 1))
        tc = _pick_divisor_tile(in_f, target, aligns=(256, 128))
        grid = (in_f // tc,)
        kernel = functools.partial(_adapt_pre_kernel, scaling=scaling, do_rri=do_rri)
        in_specs = [
            pl.BlockSpec((out_f, tc), lambda c: (0, c)),     # W column tile (pipelined)
            pl.BlockSpec((r, out_f), lambda c: (0, 0)),      # A (tiny, resident)
            pl.BlockSpec((out_f, r), lambda c: (0, 0)),      # B (tiny, resident)
        ]
        out_spec = pl.BlockSpec((out_f, tc), lambda c: (0, c))
        tile_elems = out_f * tc
    else:
        # Tile W / adapted over out_features rows; B, A (tiny) stay resident.
        per_row = 2 * in_f * item + 2 * in_f * a_item + 4 * in_f + 4 * r
        target = max(8, (budget // 2) // max(per_row, 1))
        tr = _pick_divisor_tile(out_f, target, aligns=(256, 128, 8))
        grid = (out_f // tr,)
        kernel = functools.partial(_adapt_post_kernel, scaling=scaling, do_rri=do_rri)
        in_specs = [
            pl.BlockSpec((tr, in_f), lambda i: (i, 0)),      # W row tile (pipelined)
            pl.BlockSpec((r, in_f), lambda i: (0, 0)),       # A (tiny, resident)
            pl.BlockSpec((in_f, r), lambda i: (0, 0)),       # B (tiny, resident)
        ]
        out_spec = pl.BlockSpec((tr, in_f), lambda i: (i, 0))
        tile_elems = tr * in_f

    small = 4 * r * (out_f + in_f) * item
    vmem = int(2 * tile_elems * (item + a_item)              # double-buffered W/adapted tiles
               + 4 * tile_elems + small + (4 << 20))         # f32 intermediate + A/B + margin
    vmem = int(min(max(vmem * 5 // 4, 16 << 20), budget))

    return pl.pallas_call(
        kernel,
        out_shape=jax.ShapeDtypeStruct((out_f, in_f), adapted_dtype),
        grid=grid,
        in_specs=in_specs,
        out_specs=out_spec,
        compiler_params=pltpu.CompilerParams(
            dimension_semantics=("parallel",),
            vmem_limit_bytes=vmem),
    )(weight, lora_A, lora_B)


# ---------------------------------------------------------------------------
# Stage 2 (materialized path): y = x @ adapted_W.T + bias
# ---------------------------------------------------------------------------
def _linear_kernel(x_ref, w_ref, bias_ref, o_ref):
    # Contract on in_features of both operands (no materialized transpose); f32 MXU acc.
    x = _as(x_ref[...], w_ref.dtype)
    y = lax.dot_general(x, w_ref[...], (((1,), (1,)), ((), ())),
                        preferred_element_type=jnp.float32)
    o_ref[...] = (y + _as(bias_ref[...], jnp.float32)).astype(o_ref.dtype)


def _linear_resident_call(x2d, adapted, bias2d, out_dtype, *, tm, x_depth, use_pm, vmem):
    m_pad, in_f = x2d.shape
    out_f = adapted.shape[0]
    return pl.pallas_call(
        _linear_kernel,
        out_shape=jax.ShapeDtypeStruct((m_pad, out_f), out_dtype),
        grid=(m_pad // tm,),
        in_specs=[
            _spec((tm, in_f), lambda i: (i, 0),
                  buffers=(x_depth if x_depth != 2 else None), enable=use_pm),
            _spec((out_f, in_f), lambda i: (0, 0), buffers=1, enable=use_pm),   # resident W
            _spec((1, out_f), lambda i: (0, 0), buffers=1, enable=use_pm),      # resident bias
        ],
        out_specs=pl.BlockSpec((tm, out_f), lambda i: (i, 0)),
        compiler_params=pltpu.CompilerParams(
            dimension_semantics=("parallel",),
            vmem_limit_bytes=vmem),
    )(x2d, adapted, bias2d)


def _linear_ntiled_call(x2d, adapted, bias2d, out_dtype, *, tm, tn, vmem):
    # Fallback when the full weight cannot stay resident: stream (tn, in) weight tiles.
    m_pad, in_f = x2d.shape
    out_f = adapted.shape[0]
    return pl.pallas_call(
        _linear_kernel,
        out_shape=jax.ShapeDtypeStruct((m_pad, out_f), out_dtype),
        grid=(out_f // tn, m_pad // tm),       # N outer, M inner: W tile reused across M tiles
        in_specs=[
            pl.BlockSpec((tm, in_f), lambda j, i: (i, 0)),
            pl.BlockSpec((tn, in_f), lambda j, i: (j, 0)),
            pl.BlockSpec((1, tn), lambda j, i: (0, j)),
        ],
        out_specs=pl.BlockSpec((tm, tn), lambda j, i: (i, j)),
        compiler_params=pltpu.CompilerParams(
            dimension_semantics=("parallel", "parallel"),
            vmem_limit_bytes=vmem),
    )(x2d, adapted, bias2d)


# ---------------------------------------------------------------------------
# Fused path: never materialize adapted_W (small / medium M).
# ---------------------------------------------------------------------------
def _fused_pre_kernel(x_ref, w_ref, a_ref, b_ref, bias_ref, o_ref, *, scaling, do_rri):
    # x: (tm, in), W: (out, in), A: (r, out), B: (out, r), bias: (1, out)
    w = w_ref[...]
    x = _as(x_ref[...], w.dtype)
    h = lax.dot_general(x, w, (((1,), (1,)), ((), ())),
                        preferred_element_type=jnp.float32)            # (tm, out)
    a = a_ref[...]
    u = lax.dot_general(_as(h, a.dtype), a, (((1,), (1,)), ((), ())),
                        preferred_element_type=jnp.float32)            # (tm, r)
    b = b_ref[...]
    u = _as(u * scaling, b.dtype)
    y = lax.dot_general(u, b, (((1,), (1,)), ((), ())),
                        preferred_element_type=jnp.float32)            # (tm, out)
    if do_rri:
        y = y + h
    o_ref[...] = (y + _as(bias_ref[...], jnp.float32)).astype(o_ref.dtype)


def _fused_post_kernel(x_ref, w_ref, a_ref, b_ref, bias_ref, o_ref, *, scaling, do_rri):
    # x: (tm, in), W: (out, in), A: (r, in), B: (in, r), bias: (1, out)
    x = x_ref[...]
    a = a_ref[...]
    u = lax.dot_general(_as(x, a.dtype), a, (((1,), (1,)), ((), ())),
                        preferred_element_type=jnp.float32)            # (tm, r)
    b = b_ref[...]
    v = lax.dot_general(_as(u, b.dtype), b, (((1,), (1,)), ((), ())),
                        preferred_element_type=jnp.float32)            # (tm, in)
    w = w_ref[...]
    if do_rri:
        x_adj = _as(x, jnp.float32) + scaling * v
    else:
        x_adj = v                        # torch: no scaling on mode="post", do_rri=False
    y = lax.dot_general(_as(x_adj, w.dtype), w, (((1,), (1,)), ((), ())),
                        preferred_element_type=jnp.float32)            # (tm, out)
    o_ref[...] = (y + _as(bias_ref[...], jnp.float32)).astype(o_ref.dtype)


def _fused_call(x2d, weight, lora_A, lora_B, bias2d, out_dtype, *, mode, scaling,
                do_rri, tm, x_depth, use_pm, vmem):
    m_pad, in_f = x2d.shape
    out_f = weight.shape[0]
    kernel = functools.partial(
        _fused_pre_kernel if mode == "pre" else _fused_post_kernel,
        scaling=scaling, do_rri=do_rri)
    return pl.pallas_call(
        kernel,
        out_shape=jax.ShapeDtypeStruct((m_pad, out_f), out_dtype),
        grid=(m_pad // tm,),
        in_specs=[
            _spec((tm, in_f), lambda i: (i, 0),
                  buffers=(x_depth if x_depth != 2 else None), enable=use_pm),
            _spec((out_f, in_f), lambda i: (0, 0), buffers=1, enable=use_pm),   # resident W
            _spec(lora_A.shape, lambda i: (0, 0), buffers=1, enable=use_pm),    # resident A
            _spec(lora_B.shape, lambda i: (0, 0), buffers=1, enable=use_pm),    # resident B
            _spec((1, out_f), lambda i: (0, 0), buffers=1, enable=use_pm),      # resident bias
        ],
        out_specs=pl.BlockSpec((tm, out_f), lambda i: (i, 0)),
        compiler_params=pltpu.CompilerParams(
            dimension_semantics=("parallel",),
            vmem_limit_bytes=vmem),
    )(x2d, weight, lora_A, lora_B, bias2d)


# ---------------------------------------------------------------------------
# Public wrapper — matches the torch forward.
# ---------------------------------------------------------------------------
def lorma_linear_plus(x, weight, bias, lora_A, lora_B, *,
                      mode, do_rri, lorma_r, lorma_alpha, path="auto", tm=None):
    """x: (..., in_features) -> (..., out_features). Matches LormaLinear_plus.forward."""
    assert mode in ("pre", "post")
    assert path in ("auto", "fused", "materialize")
    scaling = float(lorma_alpha) / float(lorma_r)
    out_f, in_f = weight.shape

    lead = x.shape[:-1]
    x2d = x.reshape((-1, in_f))
    M = x2d.shape[0]

    out_dtype = x.dtype
    # Store adapted / compute residual in the wider of (x, weight) dtypes so a bf16
    # activation with an f32 weight does not quantize the (+W) residual.
    adapted_dtype = jnp.promote_types(x.dtype, weight.dtype)

    if bias is None:
        bias = jnp.zeros((out_f,), dtype=adapted_dtype)
    bias2d = bias.reshape((1, out_f))

    x_item = jnp.dtype(x.dtype).itemsize
    w_item = jnp.dtype(adapted_dtype).itemsize
    budget = _vmem_budget_bytes()
    weight_bytes = out_f * in_f * w_item

    # ---- row tile: sublane-aligned, minimal padding; bigger on 128-MiB-VMEM parts ----
    max_tm = 512
    if budget >= (96 << 20):
        big_tiles = 1024 * (in_f + out_f) * x_item * 2 + 4 * 1024 * (in_f + out_f)
        if weight_bytes + big_tiles + (8 << 20) <= budget:
            max_tm = 1024
    if tm is None:
        tm = _pick_tm(M, x_item, max_tm=max_tm)
    else:
        sub = _sublane_rows(x_item)
        tm = max(sub, _round_up(tm, sub))
    m_pad = _round_up(max(M, 1), tm)
    if m_pad != M:
        x2d = jnp.pad(x2d, ((0, m_pad - M), (0, 0)))

    # ---- can the full (out, in) weight stay resident (single-buffered)? ----
    tile_bytes = 2 * tm * in_f * x_item + 2 * tm * out_f * x_item    # x / y double-buffered
    fp32_scratch = 4 * tm * (out_f + in_f)                           # in-kernel f32 temps
    resident_need = weight_bytes + tile_bytes + fp32_scratch + 2 * out_f * w_item + (4 << 20)
    fits_resident = resident_need <= budget

    # deepen x buffering when out << in (cheap compute per tile, x DMA exposed)
    x_depth = 3 if (fits_resident and out_f * 2 <= in_f
                    and resident_need + tm * in_f * x_item <= budget) else 2

    if path == "auto":
        # Fused path skips the (out,in) adapted-weight HBM write/read and the rank-r
        # (out,in)-output matmul; a clear win whenever M is small relative to the layer.
        k_side = in_f if mode == "pre" else out_f
        path = "fused" if (fits_resident and M <= 2 * k_side) else "materialize"
    if path == "fused" and not fits_resident:
        path = "materialize"

    if path == "fused":
        lora_bytes = 4 * lorma_r * (in_f + out_f) * w_item
        vmem = int(min(max((resident_need + lora_bytes) * 5 // 4, 16 << 20), budget))

        def call(use_pm):
            return _fused_call(x2d, weight, lora_A, lora_B, bias2d, out_dtype,
                               mode=mode, scaling=scaling, do_rri=do_rri,
                               tm=tm, x_depth=x_depth, use_pm=use_pm, vmem=vmem)
        try:
            out = call(True)
        except Exception:          # pipeline_mode unsupported on this JAX build
            out = call(False)
    else:
        adapted = _adapt_weight(weight, lora_A, lora_B, mode=mode, scaling=scaling,
                                do_rri=do_rri, adapted_dtype=adapted_dtype)
        if fits_resident:
            vmem = int(min(max(resident_need * 5 // 4, 16 << 20), budget))

            def call(use_pm):
                return _linear_resident_call(x2d, adapted, bias2d, out_dtype, tm=tm,
                                             x_depth=x_depth, use_pm=use_pm, vmem=vmem)
            try:
                out = call(True)
            except Exception:
                out = call(False)
        else:
            # N-tiled fallback: stream (tn, in) weight tiles over out_features.
            # TODO(synk): add K (in_features) tiling for layers where even one weight
            #             row-strip exceeds the VMEM budget.
            per_n = 2 * in_f * w_item
            target_tn = max(256, (budget - tile_bytes - fp32_scratch - (4 << 20)) // max(per_n, 1))
            tn = _pick_divisor_tile(out_f, target_tn, aligns=(256, 128, 8))
            need = (2 * tn * in_f * w_item + 2 * tm * in_f * x_item + 2 * tm * tn * x_item
                    + 4 * tm * tn + 2 * tn * w_item + (4 << 20))
            vmem = int(min(max(need * 5 // 4, 16 << 20), budget))
            out = _linear_ntiled_call(x2d, adapted, bias2d, out_dtype, tm=tm, tn=tn, vmem=vmem)

    if m_pad != M:
        out = out[:M]
    return out.reshape(lead + (out_f,))


# ---------------------------------------------------------------------------
# Pure-JAX reference (mirrors the torch forward exactly).
# ---------------------------------------------------------------------------
def _reference(x, weight, bias, lora_A, lora_B, *, mode, do_rri, lorma_r, lorma_alpha):
    scaling = float(lorma_alpha) / float(lorma_r)
    w = weight.astype(jnp.float32)
    a = lora_A.astype(jnp.float32)
    b = lora_B.astype(jnp.float32)
    if mode == "pre":
        adapted = b @ (a @ w) * scaling
        if do_rri:
            adapted = adapted + w
    else:
        if do_rri:
            adapted = w @ b @ a * scaling + w
        else:
            adapted = w @ b @ a
    y = x.astype(jnp.float32) @ adapted.T + bias.astype(jnp.float32)
    return y.astype(x.dtype)


if __name__ == "__main__":
    in_features, out_features = 32, 48
    lorma_r, lorma_alpha = 4, 8

    key = jax.random.PRNGKey(0)
    kx, kx2, kw, kbias, ka_pre, kb_pre, ka_post, kb_post = jax.random.split(key, 8)

    # M = 16 (multiple of 8) and M = 14 (exercises padding / remainder handling).
    x_even = jax.random.normal(kx, (2, 8, in_features), dtype=jnp.float32)
    x_odd = jax.random.normal(kx2, (2, 7, in_features), dtype=jnp.float32)

    bound_w = 1.0 / math.sqrt(in_features)
    weight = jax.random.uniform(kw, (out_features, in_features), jnp.float32, -bound_w, bound_w)
    bias = jax.random.uniform(kbias, (out_features,), jnp.float32, -bound_w, bound_w)

    # mode="pre" adapters: lora_B (out, r), lora_A (r, out)
    lora_B_pre = jax.random.uniform(kb_pre, (out_features, lorma_r), jnp.float32, -0.5, 0.5)
    lora_A_pre = jax.random.uniform(ka_pre, (lorma_r, out_features), jnp.float32, -0.5, 0.5)

    # mode="post" adapters: lora_B (in, r), lora_A (r, in)
    lora_B_post = jax.random.uniform(kb_post, (in_features, lorma_r), jnp.float32, -0.5, 0.5)
    lora_A_post = jax.random.uniform(ka_post, (lorma_r, in_features), jnp.float32, -0.5, 0.5)

    configs = (
        ("pre", True, lora_A_pre, lora_B_pre),
        ("pre", False, lora_A_pre, lora_B_pre),
        ("post", True, lora_A_post, lora_B_post),
        ("post", False, lora_A_post, lora_B_post),
    )

    ok = True
    for x in (x_even, x_odd):
        for mode, do_rri, A, B in configs:
            y_ref = _reference(
                x, weight, bias, A, B,
                mode=mode, do_rri=do_rri, lorma_r=lorma_r, lorma_alpha=lorma_alpha)
            for path in ("fused", "materialize"):
                y = lorma_linear_plus(
                    x, weight, bias, A, B,
                    mode=mode, do_rri=do_rri, lorma_r=lorma_r, lorma_alpha=lorma_alpha,
                    path=path)
                y = jax.block_until_ready(y)
                if not jnp.allclose(y, y_ref, atol=1e-4, rtol=1e-4):
                    ok = False
                    print(f"MISMATCH mode={mode} do_rri={do_rri} path={path} "
                          f"M={x.shape[0] * x.shape[1]}")

    if ok:
        print("KERNEL_OK")
</pallas_src>

<mosaic_0001>
module attributes {stable_mosaic.version = 11 : i64} {
  func.func @_fused_pre_kernel(%arg0: i32, %arg1: memref<16x32xf32, #tpu.memory_space<vmem>>, %arg2: memref<48x32xf32, #tpu.memory_space<vmem>>, %arg3: memref<4x48xf32, #tpu.memory_space<vmem>>, %arg4: memref<48x4xf32, #tpu.memory_space<vmem>>, %arg5: memref<1x48xf32, #tpu.memory_space<vmem>>, %arg6: memref<16x48xf32, #tpu.memory_space<vmem>>) attributes {dimension_semantics = [#tpu.dimension_semantics<parallel>], iteration_bounds = array<i64: 1>, scalar_prefetch = 0 : i64, scratch_operands = 0 : i64, tpu.core_type = #tpu.core_type<tc>, window_params = [{transform_indices = @transform_0, window_bounds = array<i64: 16, 32>}, {pipeline_mode = #tpu.pipeline_mode<synchronous>, transform_indices = @transform_1, window_bounds = array<i64: 48, 32>}, {pipeline_mode = #tpu.pipeline_mode<synchronous>, transform_indices = @transform_2, window_bounds = array<i64: 4, 48>}, {pipeline_mode = #tpu.pipeline_mode<synchronous>, transform_indices = @transform_3, window_bounds = array<i64: 48, 4>}, {pipeline_mode = #tpu.pipeline_mode<synchronous>, transform_indices = @transform_4, window_bounds = array<i64: 1, 48>}, {transform_indices = @transform_5, window_bounds = array<i64: 16, 48>}]} {
    %c0 = arith.constant 0 : index
    %c0_0 = arith.constant 0 : index
    %0 = vector.load %arg2[%c0, %c0_0] : memref<48x32xf32, #tpu.memory_space<vmem>>, vector<48x32xf32>
    %c0_1 = arith.constant 0 : index
    %c0_2 = arith.constant 0 : index
    %1 = vector.load %arg1[%c0_1, %c0_2] : memref<16x32xf32, #tpu.memory_space<vmem>>, vector<16x32xf32>
    %cst = arith.constant dense<0.000000e+00> : vector<16x48xf32>
    %2 = tpu.matmul %1, %0, %cst {dimension_numbers = #tpu.dot_dimension_numbers<[1], [1], [0], [0], [0, 0, 1, 0], [], []>} : vector<16x32xf32>, vector<48x32xf32>, vector<16x48xf32> -> vector<16x48xf32>
    %c0_3 = arith.constant 0 : index
    %c0_4 = arith.constant 0 : index
    %3 = vector.load %arg3[%c0_3, %c0_4] : memref<4x48xf32, #tpu.memory_space<vmem>>, vector<4x48xf32>
    %cst_5 = arith.constant dense<0.000000e+00> : vector<16x4xf32>
    %4 = tpu.matmul %2, %3, %cst_5 {dimension_numbers = #tpu.dot_dimension_numbers<[1], [1], [0], [0], [0, 0, 1, 0], [], []>} : vector<16x48xf32>, vector<4x48xf32>, vector<16x4xf32> -> vector<16x4xf32>
    %c0_6 = arith.constant 0 : index
    %c0_7 = arith.constant 0 : index
    %5 = vector.load %arg4[%c0_6, %c0_7] : memref<48x4xf32, #tpu.memory_space<vmem>>, vector<48x4xf32>
    %cst_8 = arith.constant 2.000000e+00 : f32
    %6 = vector.broadcast %cst_8 : f32 to vector<16x4xf32>
    %7 = arith.mulf %4, %6 : vector<16x4xf32>
    %cst_9 = arith.constant dense<0.000000e+00> : vector<16x48xf32>
    %8 = tpu.matmul %7, %5, %cst_9 {dimension_numbers = #tpu.dot_dimension_numbers<[1], [1], [0], [0], [0, 0, 1, 0], [], []>} : vector<16x4xf32>, vector<48x4xf32>, vector<16x48xf32> -> vector<16x48xf32>
    %9 = arith.addf %8, %2 : vector<16x48xf32>
    %c0_10 = arith.constant 0 : index
    %c0_11 = arith.constant 0 : index
    %10 = vector.load %arg5[%c0_10, %c0_11] : memref<1x48xf32, #tpu.memory_space<vmem>>, vector<1x48xf32>
    %11 = vector.broadcast %10 : vector<1x48xf32> to vector<16x48xf32>
    %12 = arith.addf %9, %11 : vector<16x48xf32>
    %c0_12 = arith.constant 0 : index
    %c0_13 = arith.constant 0 : index
    %13 = vector.load %arg6[%c0_12, %c0_13] : memref<16x48xf32, #tpu.memory_space<vmem>>, vector<16x48xf32>
    tpu.vector_store %arg6[%c0_12, %c0_13], %12 {strides = array<i32>} : memref<16x48xf32, #tpu.memory_space<vmem>>, vector<16x48xf32>,
    return
  }
  func.func @transform_0(%arg0: i32) -> (i32, i32) {
    %c0_i32 = arith.constant 0 : i32
    %c0_i32_0 = arith.constant 0 : i32
    return %arg0, %c0_i32 : i32, i32
  }
  func.func @transform_1(%arg0: i32) -> (i32, i32) {
    %c0_i32 = arith.constant 0 : i32
    %c0_i32_0 = arith.constant 0 : i32
    %c0_i32_1 = arith.constant 0 : i32
    return %c0_i32, %c0_i32_0 : i32, i32
  }
  func.func @transform_2(%arg0: i32) -> (i32, i32) {
    %c0_i32 = arith.constant 0 : i32
    %c0_i32_0 = arith.constant 0 : i32
    %c0_i32_1 = arith.constant 0 : i32
    return %c0_i32, %c0_i32_0 : i32, i32
  }
  func.func @transform_3(%arg0: i32) -> (i32, i32) {
    %c0_i32 = arith.constant 0 : i32
    %c0_i32_0 = arith.constant 0 : i32
    %c0_i32_1 = arith.constant 0 : i32
    return %c0_i32, %c0_i32_0 : i32, i32
  }
  func.func @transform_4(%arg0: i32) -> (i32, i32) {
    %c0_i32 = arith.constant 0 : i32
    %c0_i32_0 = arith.constant 0 : i32
    %c0_i32_1 = arith.constant 0 : i32
    return %c0_i32, %c0_i32_0 : i32, i32
  }
  func.func @transform_5(%arg0: i32) -> (i32, i32) {
    %c0_i32 = arith.constant 0 : i32
    %c0_i32_0 = arith.constant 0 : i32
    return %arg0, %c0_i32 : i32, i32
  }
}

module attributes {stable_mosaic.version = 11 : i64} {
  func.func @_fused_pre_kernel(%arg0: i32, %arg1: memref<16x32xf32, #tpu.memory_space<vmem>>, %arg2: memref<48x32xf32, #tpu.memory_space<vmem>>, %arg3: memref<4x48xf32, #tpu.memory_space<vmem>>, %arg4: memref<48x4xf32, #tpu.memory_space<vmem>>, %arg5: memref<1x48xf32, #tpu.memory_space<vmem>>, %arg6: memref<16x48xf32, #tpu.memory_space<vmem>>) attributes {dimension_semantics = [#tpu.dimension_semantics<parallel>], iteration_bounds = array<i64: 1>, scalar_prefetch = 0 : i64, scratch_operands = 0 : i64, tpu.core_type = #tpu.core_type<tc>, window_params = [{transform_indices = @transform_0, window_bounds = array<i64: 16, 32>}, {pipeline_mode = #tpu.pipeline_mode<synchronous>, transform_indices = @transform_1, window_bounds = array<i64: 48, 32>}, {pipeline_mode = #tpu.pipeline_mode<synchronous>, transform_indices = @transform_2, window_bounds = array<i64: 4, 48>}, {pipeline_mode = #tpu.pipeline_mode<synchronous>, transform_indices = @transform_3, window_bounds = array<i64: 48, 4>}, {pipeline_mode = #tpu.pipeline_mode<synchronous>, transform_indices = @transform_4, window_bounds = array<i64: 1, 48>}, {transform_indices = @transform_5, window_bounds = array<i64: 16, 48>}]} {
    %c0 = arith.constant 0 : index
    %c0_0 = arith.constant 0 : index
    %0 = vector.load %arg2[%c0, %c0_0] : memref<48x32xf32, #tpu.memory_space<vmem>>, vector<48x32xf32>
    %c0_1 = arith.constant 0 : index
    %c0_2 = arith.constant 0 : index
    %1 = vector.load %arg1[%c0_1, %c0_2] : memref<16x32xf32, #tpu.memory_space<vmem>>, vector<16x32xf32>
    %cst = arith.constant dense<0.000000e+00> : vector<16x48xf32>
    %2 = tpu.matmul %1, %0, %cst {dimension_numbers = #tpu.dot_dimension_numbers<[1], [1], [0], [0], [0, 0, 1, 0], [], []>} : vector<16x32xf32>, vector<48x32xf32>, vector<16x48xf32> -> vector<16x48xf32>
    %c0_3 = arith.constant 0 : index
    %c0_4 = arith.constant 0 : index
    %3 = vector.load %arg3[%c0_3, %c0_4] : memref<4x48xf32, #tpu.memory_space<vmem>>, vector<4x48xf32>
    %cst_5 = arith.constant dense<0.000000e+00> : vector<16x4xf32>
    %4 = tpu.matmul %2, %3, %cst_5 {dimension_numbers = #tpu.dot_dimension_numbers<[1], [1], [0], [0], [0, 0, 1, 0], [], []>} : vector<16x48xf32>, vector<4x48xf32>, vector<16x4xf32> -> vector<16x4xf32>
    %c0_6 = arith.constant 0 : index
    %c0_7 = arith.constant 0 : index
    %5 = vector.load %arg4[%c0_6, %c0_7] : memref<48x4xf32, #tpu.memory_space<vmem>>, vector<48x4xf32>
    %cst_8 = arith.constant 2.000000e+00 : f32
    %6 = vector.broadcast %cst_8 : f32 to vector<16x4xf32>
    %7 = arith.mulf %4, %6 : vector<16x4xf32>
    %cst_9 = arith.constant dense<0.000000e+00> : vector<16x48xf32>
    %8 = tpu.matmul %7, %5, %cst_9 {dimension_numbers = #tpu.dot_dimension_numbers<[1], [1], [0], [0], [0, 0, 1, 0], [], []>} : vector<16x4xf32>, vector<48x4xf32>, vector<16x48xf32> -> vector<16x48xf32>
    %9 = arith.addf %8, %2 : vector<16x48xf32>
    %c0_10 = arith.constant 0 : index
    %c0_11 = arith.constant 0 : index
    %10 = vector.load %arg5[%c0_10, %c0_11] : memref<1x48xf32, #tpu.memory_space<vmem>>, vector<1x48xf32>
    %11 = vector.broadcast %10 : vector<1x48xf32> to vector<16x48xf32>
    %12 = arith.addf %9, %11 : vector<16x48xf32>
    %c0_12 = arith.constant 0 : index
    %c0_13 = arith.constant 0 : index
    %13 = vector.load %arg6[%c0_12, %c0_13] : memref<16x48xf32, #tpu.memory_space<vmem>>, vector<16x48xf32>
    tpu.vector_store %arg6[%c0_12, %c0_13], %12 {strides = array<i32>} : memref<16x48xf32, #tpu.memory_space<vmem>>, vector<16x48xf32>,
    return
  }
  func.func @transform_0(%arg0: i32) -> (i32, i32) {
    %c0_i32 = arith.constant 0 : i32
    %c0_i32_0 = arith.constant 0 : i32
    return %arg0, %c0_i32 : i32, i32
  }
  func.func @transform_1(%arg0: i32) -> (i32, i32) {
    %c0_i32 = arith.constant 0 : i32
    %c0_i32_0 = arith.constant 0 : i32
    %c0_i32_1 = arith.constant 0 : i32
    return %c0_i32, %c0_i32_0 : i32, i32
  }
  func.func @transform_2(%arg0: i32) -> (i32, i32) {
    %c0_i32 = arith.constant 0 : i32
    %c0_i32_0 = arith.constant 0 : i32
    %c0_i32_1 = arith.constant 0 : i32
    return %c0_i32, %c0_i32_0 : i32, i32
  }
  func.func @transform_3(%arg0: i32) -> (i32, i32) {
    %c0_i32 = arith.constant 0 : i32
    %c0_i32_0 = arith.constant 0 : i32
    %c0_i32_1 = arith.constant 0 : i32
    return %c0_i32, %c0_i32_0 : i32, i32
  }
  func.func @transform_4(%arg0: i32) -> (i32, i32) {
    %c0_i32 = arith.constant 0 : i32
    %c0_i32_0 = arith.constant 0 : i32
    %c0_i32_1 = arith.constant 0 : i32
    return %c0_i32, %c0_i32_0 : i32, i32
  }
  func.func @transform_5(%arg0: i32) -> (i32, i32) {
    %c0_i32 = arith.constant 0 : i32
    %c0_i32_0 = arith.constant 0 : i32
    return %arg0, %c0_i32 : i32, i32
  }
}

</mosaic_0001>

<llo_original>
// kernel: tpu_custom_call.1
$region0: #{tpu_custom_call.1}
  #allocation0 [shape = 'u32[]', space=smem, size = 0x4, offset = 0x4, fixed_abs, tag = 'smem constant byte address 0x4 - core index']
  #allocation1 [shape = 'u32[72,128]{1,0:T(1,128)}', space=vmem, size = 0x9000, scoped, tag = 'internal scratch']
  %s0 = inlined_call_operand.vmem [shape: f32[16,32], index: 0, kind: input, shape index: {}]
  %s1 = inlined_call_operand.vmem [shape: f32[48,32], index: 1, kind: input, shape index: {}]
  %s2 = inlined_call_operand.vmem [shape: f32[4,48], index: 2, kind: input, shape index: {}]
  %s3 = inlined_call_operand.vmem [shape: f32[48,4], index: 3, kind: input, shape index: {}]
  %s4 = inlined_call_operand.vmem [shape: f32[1,48], index: 4, kind: input, shape index: {}]
  %s5 = inlined_call_operand.hbm [shape: f32[16,48], index: 5, kind: output, shape index: {}]
  %s6 = sld [smem:[#allocation0]]
  $region30: #{tpu_custom_call.1} parent=0
    _
  %s8 = ssub.s32 1, %s6
  %s9 = scalar_select 0, %s8, %s6
  $region1: #{tpu_custom_call.1} parent=0
    #allocation2 [shape = 'u8[8192]{0}', space=vmem, size = 0x2000, scoped, tag = 'output window, operand 0, single buffered']
    #allocation3 [shape = 's32[1]{0}', space=sflag, size = 0x4, scoped, tag = 'scoped memory for tpu_custom_call.1']
    %10 = vsyncpa [#allocation3], 0
    // Predicated region
    $region2: #{tpu_custom_call.1} parent=1 // pred_check
      _
    $region3: #{tpu_custom_call.1} parent=1 // pred_check_branch
      %12 = sbr.rel (0) target = $region5
    $region4: #{tpu_custom_call.1} parent=1 // pred_region
      _
    $region5: #{tpu_custom_call.1} parent=1 // pred_fallthru
      _
    // Predicated region
    $region6: #{tpu_custom_call.1} parent=1 // pred_check
      _
    $region7: #{tpu_custom_call.1} parent=1 // pred_check_branch
      %14 = sbr.rel (0) target = $region9
    $region8: #{tpu_custom_call.1} parent=1 // pred_region
      _
    $region9: #{tpu_custom_call.1} parent=1 // pred_fallthru
      _
    // Predicated region
    $region10: #{tpu_custom_call.1} parent=1 // pred_check
      _
    $region11: #{tpu_custom_call.1} parent=1 // pred_check_branch
      %16 = sbr.rel (0) target = $region13
    $region12: #{tpu_custom_call.1} parent=1 // pred_region
      _
    $region13: #{tpu_custom_call.1} parent=1 // pred_fallthru
      _
    // Predicated region
    $region14: #{tpu_custom_call.1} parent=1 // pred_check
      _
    $region15: #{tpu_custom_call.1} parent=1 // pred_check_branch
      %18 = sbr.rel (0) target = $region17
    $region16: #{tpu_custom_call.1} parent=1 // pred_region
      _
    $region17: #{tpu_custom_call.1} parent=1 // pred_fallthru
      _
    // Predicated region
    $region18: #{tpu_custom_call.1} parent=1 // pred_check
      _
    $region19: #{tpu_custom_call.1} parent=1 // pred_check_branch
      %20 = sbr.rel (0) target = $region21
    $region20: #{tpu_custom_call.1} parent=1 // pred_region
      _
    $region21: #{tpu_custom_call.1} parent=1 // pred_fallthru
      _
    %v21 = vld [vmem:[%s1] sm:$0xff]
    %v22 = vld [vmem:[%s1 + $0x8] sm:$0xff]
    %v23 = vld [vmem:[%s1 + $0x10] sm:$0xff]
    %v24 = vld [vmem:[%s1 + $0x18] sm:$0xff]
    %v25 = vld [vmem:[%s1 + $0x20] sm:$0xff]
    %v26 = vld [vmem:[%s1 + $0x28] sm:$0xff]
    %v27 = vld [vmem:[%s0] sm:$0xff]
    %v28 = vld [vmem:[%s0 + $0x8] sm:$0xff]
    %vm29 = vcmask 261120
    %v31 = vsel %vm29, %v27, 0
    %v34 = vsel %vm29, %v28, 0
    %v37 = vsel %vm29, %v21, 0
    %v40 = vsel %vm29, %v22, 0
    %v43 = vsel %vm29, %v23, 0
    %v46 = vsel %vm29, %v24, 0
    %v49 = vsel %vm29, %v25, 0
    %v52 = vsel %vm29, %v26, 0
    %54 = vmatpush.xpose.msra.mxu0 0.0
    %55 = vmatpush.xpose.msra.mxu0 0.0
    %56 = vmatpush.xpose.msra.mxu0 0.0
    %57 = vmatpush.xpose.msra.mxu0 0.0
    %58 = vmatpush.xpose.msra.mxu0 0.0
    %59 = vmatpush.xpose.msra.mxu0 0.0
    %60 = vmatpush.xpose.msra.mxu0 0.0
    %61 = vmatpush.xpose.msra.mxu0 0.0
    %62 = vmatpush.xpose.msra.mxu0 0.0
    %63 = vmatpush.xpose.msra.mxu0 0.0
    %64 = vmatpush.xpose.msra.mxu0 %v52
    %65 = vmatpush.xpose.msra.mxu0 %v49
    %66 = vmatpush.xpose.msra.mxu0 %v46
    %67 = vmatpush.xpose.msra.mxu0 %v43
    %68 = vmatpush.xpose.msra.mxu0 %v40
    %69 = vmatpush.xpose.msra.mxu0 %v37
    %70 = vmatmul.f32.gmra.mxu0 %v31
    %v71 = vpop.f32.mrf.mxu0
    %v72 = vadd.f32 0.0, %v71
    %73 = vmatmul.f32.gmra.mxu0 %v34
    %v74 = vpop.f32.mrf.mxu0
    %v75 = vadd.f32 0.0, %v74
    %76 = vdwg.mxu0
    %v77 = vld [vmem:[%s2] sm:$0xf]
    %vm78 = vcmask 392192
    %v80 = vsel %vm78, %v72, 0
    %v83 = vsel %vm78, %v75, 0
    %v86 = vsel %vm78, %v77, 0
    %88 = vmatpush.xpose.msra.mxu0 0.0
    %89 = vmatpush.xpose.msra.mxu0 0.0
    %90 = vmatpush.xpose.msra.mxu0 0.0
    %91 = vmatpush.xpose.msra.mxu0 0.0
    %92 = vmatpush.xpose.msra.mxu0 0.0
    %93 = vmatpush.xpose.msra.mxu0 0.0
    %94 = vmatpush.xpose.msra.mxu0 0.0
    %95 = vmatpush.xpose.msra.mxu0 0.0
    %96 = vmatpush.xpose.msra.mxu0 0.0
    %97 = vmatpush.xpose.msra.mxu0 0.0
    %98 = vmatpush.xpose.msra.mxu0 0.0
    %99 = vmatpush.xpose.msra.mxu0 0.0
    %100 = vmatpush.xpose.msra.mxu0 0.0
    %101 = vmatpush.xpose.msra.mxu0 0.0
    %102 = vmatpush.xpose.msra.mxu0 0.0
    %103 = vmatpush.xpose.msra.mxu0 %v86
    %104 = vmatmul.f32.gmra.mxu0 %v80
    %v105 = vpop.f32.mrf.mxu0
    %v106 = vadd.f32 0.0, %v105
    %107 = vmatmul.f32.gmra.mxu0 %v83
    %v108 = vpop.f32.mrf.mxu0
    %v109 = vadd.f32 0.0, %v108
    %110 = vdwg.mxu0
    %v111 = vld [vmem:[%s3] sm:$0xff]
    %v112 = vld [vmem:[%s3 + $0x8] sm:$0xff]
    %v113 = vld [vmem:[%s3 + $0x10] sm:$0xff]
    %v114 = vld [vmem:[%s3 + $0x18] sm:$0xff]
    %v115 = vld [vmem:[%s3 + $0x20] sm:$0xff]
    %v116 = vld [vmem:[%s3 + $0x28] sm:$0xff]
    %v117 = vmul.f32 %v106, 2.0
    %v118 = vmul.f32 %v109, 2.0
    %vm119 = vcmask 31744
    %v121 = vsel %vm119, %v117, 0
    %v124 = vsel %vm119, %v118, 0
    %v127 = vsel %vm119, %v111, 0
    %v130 = vsel %vm119, %v112, 0
    %v133 = vsel %vm119, %v113, 0
    %v136 = vsel %vm119, %v114, 0
    %v139 = vsel %vm119, %v115, 0
    %v142 = vsel %vm119, %v116, 0
    %144 = vmatpush.xpose.msra.mxu0 0.0
    %145 = vmatpush.xpose.msra.mxu0 0.0
    %146 = vmatpush.xpose.msra.mxu0 0.0
    %147 = vmatpush.xpose.msra.mxu0 0.0
    %148 = vmatpush.xpose.msra.mxu0 0.0
    %149 = vmatpush.xpose.msra.mxu0 0.0
    %150 = vmatpush.xpose.msra.mxu0 0.0
    %151 = vmatpush.xpose.msra.mxu0 0.0
    %152 = vmatpush.xpose.msra.mxu0 0.0
    %153 = vmatpush.xpose.msra.mxu0 0.0
    %154 = vmatpush.xpose.msra.mxu0 %v142
    %155 = vmatpush.xpose.msra.mxu0 %v139
    %156 = vmatpush.xpose.msra.mxu0 %v136
    %157 = vmatpush.xpose.msra.mxu0 %v133
    %158 = vmatpush.xpose.msra.mxu0 %v130
    %159 = vmatpush.xpose.msra.mxu0 %v127
    %160 = vmatmul.f32.gmra.mxu0 %v121
    %v161 = vpop.f32.mrf.mxu0
    %v162 = vadd.f32 %v72, %v161
    %163 = vmatmul.f32.gmra.mxu0 %v124
    %v164 = vpop.f32.mrf.mxu0
    %v165 = vadd.f32 %v75, %v164
    %166 = vdwg.mxu0
    %v167 = vld [vmem:[%s4] sm:$0x1]
    %v169 = vperm.slane %v167, 0
    %v171 = vadd.f32 %v162, %v169
    %v172 = vadd.f32 %v165, %v169
    %173 = vst.msk [vmem:[#allocation2] sm:$0xff] %vm78, %v171
    %174 = vst.msk [vmem:[#allocation2 + $0x8] sm:$0xff] %vm78, %v172
    // Predicated region
    $region22: #{tpu_custom_call.1} parent=1 // pred_check
      _
    $region23: #{tpu_custom_call.1} parent=1 // pred_check_branch
      %176 = sbr.rel (0) target = $region25
    $region24: #{tpu_custom_call.1} parent=1 // pred_region
      %178 = vsyncadd [#allocation3], 0
      %s179 = sshll.u32 [#allocation2], 4
      %s180 = int_to_ptr.vmem [resolvable:$true] %s179
      %s181 = sshll.u32 %s5, 4
      %s182 = int_to_ptr.hbm [resolvable:$true] %s181
      %187 = dma.vmem_to_hbm [thread:$0]  %s180, 256, %s182, [#allocation3], 128, 128, 8
    $region25: #{tpu_custom_call.1} parent=1 // pred_fallthru
      _
    // Predicated region
    $region26: #{tpu_custom_call.1} parent=1 // pred_check
      _
    $region27: #{tpu_custom_call.1} parent=1 // pred_check_branch
      %189 = sbr.rel (0) target = $region29
    $region28: #{tpu_custom_call.1} parent=1 // pred_region
      %191 = dma.done [#allocation3], 256
    $region29: #{tpu_custom_call.1} parent=1 // pred_fallthru
      _
    %192 = vsyncpa [#allocation3], 1

// kernel: tpu_custom_call.1
$region0: #{tpu_custom_call.1}
  #allocation0 [shape = 'u32[]', space=smem, size = 0x4, offset = 0x4, fixed_abs, tag = 'smem constant byte address 0x4 - core index']
  #allocation1 [shape = 'u32[72,128]{1,0:T(1,128)}', space=vmem, size = 0x9000, scoped, tag = 'internal scratch']
  %s0 = inlined_call_operand.vmem [shape: f32[16,32], index: 0, kind: input, shape index: {}]
  %s1 = inlined_call_operand.vmem [shape: f32[48,32], index: 1, kind: input, shape index: {}]
  %s2 = inlined_call_operand.vmem [shape: f32[4,48], index: 2, kind: input, shape index: {}]
  %s3 = inlined_call_operand.vmem [shape: f32[48,4], index: 3, kind: input, shape index: {}]
  %s4 = inlined_call_operand.vmem [shape: f32[1,48], index: 4, kind: input, shape index: {}]
  %s5 = inlined_call_operand.hbm [shape: f32[16,48], index: 5, kind: output, shape index: {}]
  %s6 = sld [smem:[#allocation0]]
  $region30: #{tpu_custom_call.1} parent=0
    _
  %s8 = ssub.s32 1, %s6
  %s9 = scalar_select 0, %s8, %s6
  $region1: #{tpu_custom_call.1} parent=0
    #allocation2 [shape = 'u8[8192]{0}', space=vmem, size = 0x2000, scoped, tag = 'output window, operand 0, single buffered']
    #allocation3 [shape = 's32[1]{0}', space=sflag, size = 0x4, scoped, tag = 'scoped memory for tpu_custom_call.1']
    %10 = vsyncpa [#allocation3], 0
    // Predicated region
    $region2: #{tpu_custom_call.1} parent=1 // pred_check
      _
    $region3: #{tpu_custom_call.1} parent=1 // pred_check_branch
      %12 = sbr.rel (0) target = $region5
    $region4: #{tpu_custom_call.1} parent=1 // pred_region
      _
    $region5: #{tpu_custom_call.1} parent=1 // pred_fallthru
      _
    // Predicated region
    $region6: #{tpu_custom_call.1} parent=1 // pred_check
      _
    $region7: #{tpu_custom_call.1} parent=1 // pred_check_branch
      %14 = sbr.rel (0) target = $region9
    $region8: #{tpu_custom_call.1} parent=1 // pred_region
      _
    $region9: #{tpu_custom_call.1} parent=1 // pred_fallthru
      _
    // Predicated region
    $region10: #{tpu_custom_call.1} parent=1 // pred_check
      _
    $region11: #{tpu_custom_call.1} parent=1 // pred_check_branch
      %16 = sbr.rel (0) target = $region13
    $region12: #{tpu_custom_call.1} parent=1 // pred_region
      _
    $region13: #{tpu_custom_call.1} parent=1 // pred_fallthru
      _
    // Predicated region
    $region14: #{tpu_custom_call.1} parent=1 // pred_check
      _
    $region15: #{tpu_custom_call.1} parent=1 // pred_check_branch
      %18 = sbr.rel (0) target = $region17
    $region16: #{tpu_custom_call.1} parent=1 // pred_region
      _
    $region17: #{tpu_custom_call.1} parent=1 // pred_fallthru
      _
    // Predicated region
    $region18: #{tpu_custom_call.1} parent=1 // pred_check
      _
    $region19: #{tpu_custom_call.1} parent=1 // pred_check_branch
      %20 = sbr.rel (0) target = $region21
    $region20: #{tpu_custom_call.1} parent=1 // pred_region
      _
    $region21: #{tpu_custom_call.1} parent=1 // pred_fallthru
      _
    %v21 = vld [vmem:[%s1] sm:$0xff]
    %v22 = vld [vmem:[%s1 + $0x8] sm:$0xff]
    %v23 = vld [vmem:[%s1 + $0x10] sm:$0xff]
    %v24 = vld [vmem:[%s1 + $0x18] sm:$0xff]
    %v25 = vld [vmem:[%s1 + $0x20] sm:$0xff]
    %v26 = vld [vmem:[%s1 + $0x28] sm:$0xff]
    %v27 = vld [vmem:[%s0] sm:$0xff]
    %v28 = vld [vmem:[%s0 + $0x8] sm:$0xff]
    %vm29 = vcmask 261120
    %v31 = vsel %vm29, %v27, 0
    %v34 = vsel %vm29, %v28, 0
    %v37 = vsel %vm29, %v21, 0
    %v40 = vsel %vm29, %v22, 0
    %v43 = vsel %vm29, %v23, 0
    %v46 = vsel %vm29, %v24, 0
    %v49 = vsel %vm29, %v25, 0
    %v52 = vsel %vm29, %v26, 0
    %54 = vmatpush.xpose.msra.mxu0 0.0
    %55 = vmatpush.xpose.msra.mxu0 0.0
    %56 = vmatpush.xpose.msra.mxu0 0.0
    %57 = vmatpush.xpose.msra.mxu0 0.0
    %58 = vmatpush.xpose.msra.mxu0 0.0
    %59 = vmatpush.xpose.msra.mxu0 0.0
    %60 = vmatpush.xpose.msra.mxu0 0.0
    %61 = vmatpush.xpose.msra.mxu0 0.0
    %62 = vmatpush.xpose.msra.mxu0 0.0
    %63 = vmatpush.xpose.msra.mxu0 0.0
    %64 = vmatpush.xpose.msra.mxu0 %v52
    %65 = vmatpush.xpose.msra.mxu0 %v49
    %66 = vmatpush.xpose.msra.mxu0 %v46
    %67 = vmatpush.xpose.msra.mxu0 %v43
    %68 = vmatpush.xpose.msra.mxu0 %v40
    %69 = vmatpush.xpose.msra.mxu0 %v37
    %70 = vmatmul.f32.gmra.mxu0 %v31
    %v71 = vpop.f32.mrf.mxu0
    %v72 = vadd.f32 0.0, %v71
    %73 = vmatmul.f32.gmra.mxu0 %v34
    %v74 = vpop.f32.mrf.mxu0
    %v75 = vadd.f32 0.0, %v74
    %76 = vdwg.mxu0
    %v77 = vld [vmem:[%s2] sm:$0xf]
    %vm78 = vcmask 392192
    %v80 = vsel %vm78, %v72, 0
    %v83 = vsel %vm78, %v75, 0
    %v86 = vsel %vm78, %v77, 0
    %88 = vmatpush.xpose.msra.mxu0 0.0
    %89 = vmatpush.xpose.msra.mxu0 0.0
    %90 = vmatpush.xpose.msra.mxu0 0.0
    %91 = vmatpush.xpose.msra.mxu0 0.0
    %92 = vmatpush.xpose.msra.mxu0 0.0
    %93 = vmatpush.xpose.msra.mxu0 0.0
    %94 = vmatpush.xpose.msra.mxu0 0.0
    %95 = vmatpush.xpose.msra.mxu0 0.0
    %96 = vmatpush.xpose.msra.mxu0 0.0
    %97 = vmatpush.xpose.msra.mxu0 0.0
    %98 = vmatpush.xpose.msra.mxu0 0.0
    %99 = vmatpush.xpose.msra.mxu0 0.0
    %100 = vmatpush.xpose.msra.mxu0 0.0
    %101 = vmatpush.xpose.msra.mxu0 0.0
    %102 = vmatpush.xpose.msra.mxu0 0.0
    %103 = vmatpush.xpose.msra.mxu0 %v86
    %104 = vmatmul.f32.gmra.mxu0 %v80
    %v105 = vpop.f32.mrf.mxu0
    %v106 = vadd.f32 0.0, %v105
    %107 = vmatmul.f32.gmra.mxu0 %v83
    %v108 = vpop.f32.mrf.mxu0
    %v109 = vadd.f32 0.0, %v108
    %110 = vdwg.mxu0
    %v111 = vld [vmem:[%s3] sm:$0xff]
    %v112 = vld [vmem:[%s3 + $0x8] sm:$0xff]
    %v113 = vld [vmem:[%s3 + $0x10] sm:$0xff]
    %v114 = vld [vmem:[%s3 + $0x18] sm:$0xff]
    %v115 = vld [vmem:[%s3 + $0x20] sm:$0xff]
    %v116 = vld [vmem:[%s3 + $0x28] sm:$0xff]
    %v117 = vmul.f32 %v106, 2.0
    %v118 = vmul.f32 %v109, 2.0
    %vm119 = vcmask 31744
    %v121 = vsel %vm119, %v117, 0
    %v124 = vsel %vm119, %v118, 0
    %v127 = vsel %vm119, %v111, 0
    %v130 = vsel %vm119, %v112, 0
    %v133 = vsel %vm119, %v113, 0
    %v136 = vsel %vm119, %v114, 0
    %v139 = vsel %vm119, %v115, 0
    %v142 = vsel %vm119, %v116, 0
    %144 = vmatpush.xpose.msra.mxu0 0.0
    %145 = vmatpush.xpose.msra.mxu0 0.0
    %146 = vmatpush.xpose.msra.mxu0 0.0
    %147 = vmatpush.xpose.msra.mxu0 0.0
    %148 = vmatpush.xpose.msra.mxu0 0.0
    %149 = vmatpush.xpose.msra.mxu0 0.0
    %150 = vmatpush.xpose.msra.mxu0 0.0
    %151 = vmatpush.xpose.msra.mxu0 0.0
    %152 = vmatpush.xpose.msra.mxu0 0.0
    %153 = vmatpush.xpose.msra.mxu0 0.0
    %154 = vmatpush.xpose.msra.mxu0 %v142
    %155 = vmatpush.xpose.msra.mxu0 %v139
    %156 = vmatpush.xpose.msra.mxu0 %v136
    %157 = vmatpush.xpose.msra.mxu0 %v133
    %158 = vmatpush.xpose.msra.mxu0 %v130
    %159 = vmatpush.xpose.msra.mxu0 %v127
    %160 = vmatmul.f32.gmra.mxu0 %v121
    %v161 = vpop.f32.mrf.mxu0
    %v162 = vadd.f32 %v72, %v161
    %163 = vmatmul.f32.gmra.mxu0 %v124
    %v164 = vpop.f32.mrf.mxu0
    %v165 = vadd.f32 %v75, %v164
    %166 = vdwg.mxu0
    %v167 = vld [vmem:[%s4] sm:$0x1]
    %v169 = vperm.slane %v167, 0
    %v171 = vadd.f32 %v162, %v169
    %v172 = vadd.f32 %v165, %v169
    %173 = vst.msk [vmem:[#allocation2] sm:$0xff] %vm78, %v171
    %174 = vst.msk [vmem:[#allocation2 + $0x8] sm:$0xff] %vm78, %v172
    // Predicated region
    $region22: #{tpu_custom_call.1} parent=1 // pred_check
      _
    $region23: #{tpu_custom_call.1} parent=1 // pred_check_branch
      %176 = sbr.rel (0) target = $region25
    $region24: #{tpu_custom_call.1} parent=1 // pred_region
      %178 = vsyncadd [#allocation3], 0
      %s179 = sshll.u32 [#allocation2], 4
      %s180 = int_to_ptr.vmem [resolvable:$true] %s179
      %s181 = sshll.u32 %s5, 4
      %s182 = int_to_ptr.hbm [resolvable:$true] %s181
      %187 = dma.vmem_to_hbm [thread:$0]  %s180, 256, %s182, [#allocation3], 128, 128, 8
    $region25: #{tpu_custom_call.1} parent=1 // pred_fallthru
      _
    // Predicated region
    $region26: #{tpu_custom_call.1} parent=1 // pred_check
      _
    $region27: #{tpu_custom_call.1} parent=1 // pred_check_branch
      %189 = sbr.rel (0) target = $region29
    $region28: #{tpu_custom_call.1} parent=1 // pred_region
      %191 = dma.done [#allocation3], 256
    $region29: #{tpu_custom_call.1} parent=1 // pred_fallthru
      _
    %192 = vsyncpa [#allocation3], 1

</llo_original>
